<compile_context>
chip_gen: v5e
topology: v5e:2x2
jax: 0.10.0
libtpu: 0.0.40
codegen_flags: <defaults>
</compile_context>

<pallas_src>
import functools

import jax
import jax.numpy as jnp
from jax.experimental import pallas as pl
from jax.experimental.pallas import tpu as pltpu


def _fused_conv1x1_bce_sum_kernel(w_ref, b_ref, x_ref, y_ref, loss_ref, *,
                                  c_in, c_out, hw, hw8, lanes, mask_mode):
    """One grid step = one lane-dense (8, lanes) spatial slab of one image.

    w_ref   : (c_in, c_out) f32 in SMEM (scalar-broadcast reads)
    b_ref   : (c_out,)      f32 in SMEM
    x_ref   : (c_in, 8, lanes)  activation slab (batch dim squeezed)
    y_ref   : (c_out, 8, lanes) label slab
    loss_ref: (1, 1)            per-(batch, step) partial loss
    """
    # Load each input channel once; each is a dense (8, lanes) slab (full vregs).
    xs = [x_ref[k].astype(jnp.float32) for k in range(c_in)]

    tile_loss = jnp.zeros((8, lanes), jnp.float32)
    for c in range(c_out):
        # 1x1 conv for output channel c: scalar-broadcast VPU FMAs (no MXU —
        # K=4 / N=3 would leave the MXU ~99.9% idle).
        z = b_ref[c] + w_ref[0, c] * xs[0]
        for k in range(1, c_in):
            z = z + w_ref[k, c] * xs[k]
        yc = y_ref[c].astype(jnp.float32)
        # Numerically-stable BCEWithLogits (same form PyTorch uses):
        #   max(z, 0) - z*y + log1p(exp(-|z|))
        tile_loss = tile_loss + (jnp.maximum(z, 0.0) - z * yc
                                 + jnp.log1p(jnp.exp(-jnp.abs(z))))

    def _masked_sum():
        # Mask padded columns / padded flat positions once, on the summed loss.
        s = pl.program_id(1)
        col = s * lanes + jax.lax.broadcasted_iota(jnp.int32, (8, lanes), 1)
        row = jax.lax.broadcasted_iota(jnp.int32, (8, lanes), 0)
        valid = (col < hw8) & ((row * hw8 + col) < hw)
        return jnp.sum(jnp.where(valid, tile_loss, 0.0), keepdims=True)

    if mask_mode == "none":
        # Common case (HW % 8 == 0 and HW8 % lanes == 0): no masking anywhere.
        loss_ref[...] = jnp.sum(tile_loss, keepdims=True)
    elif mask_mode == "all":
        # Rare case (HW % 8 != 0): padded flat positions can land in any step.
        loss_ref[...] = _masked_sum()
    else:  # "last": only the final spatial step can touch padded columns.
        s = pl.program_id(1)

        @pl.when(s < pl.num_programs(1) - 1)
        def _():
            loss_ref[...] = jnp.sum(tile_loss, keepdims=True)

        @pl.when(s == pl.num_programs(1) - 1)
        def _():
            loss_ref[...] = _masked_sum()


def wrapper_model_out_loss(images_nchw, labels_nchw, weight, bias, *,
                           spatial_tile=65536, input_dtype=None):
    """Equivalent of WrapperModelOut.forward(images, labels) for a synthetic
    1x1-conv segmentation head. Returns the scalar f32 BCE-with-logits sum."""
    N, C_in, H, W = images_nchw.shape
    C_out = weight.shape[1]
    assert labels_nchw.shape == (N, C_out, H, W)
    HW = H * W
    HW8 = pl.cdiv(HW, 8)        # columns per sublane row
    HW_pad = HW8 * 8

    # Free reshapes only -- no HBM transpose; spatial axis stays lane-dense.
    x = images_nchw.reshape(N, C_in, HW)
    y = labels_nchw.reshape(N, C_out, HW)
    if input_dtype is not None:
        # Optional HBM-traffic saver (e.g. jnp.bfloat16); kernel math stays f32.
        x = x.astype(input_dtype)
        y = y.astype(input_dtype)
    if HW_pad != HW:
        # Rare: pad spatial so the (8, HW8) split is a free row-major reshape.
        x = jnp.pad(x, ((0, 0), (0, 0), (0, HW_pad - HW)))
        y = jnp.pad(y, ((0, 0), (0, 0), (0, HW_pad - HW)))
    # Dense-vreg working layout: (N, C, 8, HW8), block on the last (lane) axis.
    x = x.reshape(N, C_in, 8, HW8)
    y = y.reshape(N, C_out, 8, HW8)

    # Lane tile L (elements/step = 8*L).  Multiple of 128 lanes, or the whole
    # row when it fits; clamped so the 2-deep pipeline stays <= ~36 MiB VMEM.
    itemsize = jnp.dtype(x.dtype).itemsize
    bytes_per_lane = (C_in + C_out) * 8 * itemsize          # one pipeline buffer
    max_L = max(128, ((36 << 20) // (2 * bytes_per_lane)) // 128 * 128)
    L = max(128, (min(spatial_tile // 8, max_L) // 128) * 128)
    if L >= HW8:
        L = HW8                                             # whole row per step
    n_s = pl.cdiv(HW8, L)

    if HW_pad != HW:
        mask_mode = "all"
    elif HW8 % L != 0:
        mask_mode = "last"
    else:
        mask_mode = "none"

    # Raise the scoped VMEM limit so big (v7x-sized) tiles are legal; stays
    # well under v7x's 64 MiB physical VMEM.
    block_bytes = bytes_per_lane * L
    vmem_limit = int(min(48 << 20, max(32 << 20, 2 * block_bytes + (8 << 20))))

    kernel = functools.partial(_fused_conv1x1_bce_sum_kernel,
                               c_in=C_in, c_out=C_out, hw=HW, hw8=HW8,
                               lanes=L, mask_mode=mask_mode)

    partials = pl.pallas_call(
        kernel,
        out_shape=jax.ShapeDtypeStruct((N, n_s, 1, 1), jnp.float32),
        grid_spec=pltpu.PrefetchScalarGridSpec(
            num_scalar_prefetch=0,
            grid=(N, n_s),
            in_specs=[
                # Tiny conv params live in SMEM for cheap scalar-broadcast reads.
                pl.BlockSpec(memory_space=pltpu.MemorySpace.SMEM),   # weight
                pl.BlockSpec(memory_space=pltpu.MemorySpace.SMEM),   # bias
                # Lane-dense activation/label slabs (batch dim squeezed).
                # Default 2-deep pipeline; only deepen if a trace shows exposed
                # DMA after raising the tile size.
                pl.BlockSpec((None, C_in, 8, L), lambda n, s: (n, 0, 0, s)),
                pl.BlockSpec((None, C_out, 8, L), lambda n, s: (n, 0, 0, s)),
            ],
            # One 4-byte partial per (batch, spatial step) — no resident
            # accumulator, so both grid axes are parallel (v7x megacore).
            out_specs=pl.BlockSpec((None, None, 1, 1), lambda n, s: (n, s, 0, 0)),
        ),
        compiler_params=pltpu.CompilerParams(
            dimension_semantics=("parallel", "parallel"),
            vmem_limit_bytes=vmem_limit,
        ),
    )(weight.astype(jnp.float32), bias.astype(jnp.float32), x, y)

    # Tiny final reduction over the (N * n_s) partial losses.
    return jnp.sum(partials)


def _reference_loss(images_nchw, labels_nchw, weight, bias):
    """Pure-JAX reference mirroring the PyTorch NCHW semantics."""
    logits = jnp.einsum('nkhw,kc->nchw', images_nchw.astype(jnp.float32),
                        weight.astype(jnp.float32))
    logits = logits + bias.astype(jnp.float32)[None, :, None, None]
    yv = labels_nchw.astype(jnp.float32)
    loss = (jnp.maximum(logits, 0.0) - logits * yv
            + jnp.log1p(jnp.exp(-jnp.abs(logits))))
    return jnp.sum(loss)


if __name__ == "__main__":
    key = jax.random.PRNGKey(0)
    k_img, k_lbl, k_w, k_b = jax.random.split(key, 4)

    # Small shapes consistent with a segmentation forward pass (NCHW).
    N, C_in, H, W = 2, 4, 16, 16
    C_out = 3

    images = jax.random.normal(k_img, (N, C_in, H, W), dtype=jnp.float32)
    # BCEWithLogits targets are probabilities in [0, 1].
    labels = jax.random.uniform(k_lbl, (N, C_out, H, W), dtype=jnp.float32)

    # Deterministic synthetic "model" parameters (1x1 conv head).
    # TODO(synk): the wrapped self._model is arbitrary in the PyTorch spec; a
    # 1x1-conv segmentation head stands in for it here.
    weight = 0.1 * jax.random.normal(k_w, (C_in, C_out), dtype=jnp.float32)
    bias = 0.1 * jax.random.normal(k_b, (C_out,), dtype=jnp.float32)

    loss = wrapper_model_out_loss(images, labels, weight, bias)
    loss = jax.block_until_ready(loss)

    ref = _reference_loss(images, labels, weight, bias)
    assert jnp.allclose(loss, ref, rtol=1e-5, atol=1e-4), (loss, ref)

    print("KERNEL_OK")
</pallas_src>

<mosaic_0001>
module attributes {stable_mosaic.version = 11 : i64} {
  func.func @_fused_conv1x1_bce_sum_kernel(%arg0: i32, %arg1: i32, %arg2: memref<4x3xf32, #tpu.memory_space<smem>>, %arg3: memref<3xf32, #tpu.memory_space<smem>>, %arg4: memref<1x4x8x32xf32, #tpu.memory_space<vmem>>, %arg5: memref<1x3x8x32xf32, #tpu.memory_space<vmem>>, %arg6: memref<1x1x1x1xf32, #tpu.memory_space<vmem>>) attributes {dimension_semantics = [#tpu.dimension_semantics<parallel>, #tpu.dimension_semantics<parallel>], iteration_bounds = array<i64: 2, 1>, scalar_prefetch = 0 : i64, scratch_operands = 0 : i64, tpu.core_type = #tpu.core_type<tc>, window_params = [{transform_indices = @transform_0, window_bounds = array<i64: 4, 3>}, {transform_indices = @transform_1, window_bounds = array<i64: 3>}, {transform_indices = @transform_2, window_bounds = array<i64: 1, 4, 8, 32>}, {transform_indices = @transform_3, window_bounds = array<i64: 1, 3, 8, 32>}, {transform_indices = @transform_4, window_bounds = array<i64: 1, 1, 1, 1>}]} {
    %c0 = arith.constant 0 : index
    %c0_0 = arith.constant 0 : index
    %c0_1 = arith.constant 0 : index
    %c0_2 = arith.constant 0 : index
    %0 = vector.load %arg4[%c0, %c0_0, %c0_1, %c0_2] : memref<1x4x8x32xf32, #tpu.memory_space<vmem>>, vector<1x1x8x32xf32>
    %1 = vector.shape_cast %0 : vector<1x1x8x32xf32> to vector<8x32xf32>
    %c0_3 = arith.constant 0 : index
    %c1 = arith.constant 1 : index
    %c0_4 = arith.constant 0 : index
    %c0_5 = arith.constant 0 : index
    %2 = vector.load %arg4[%c0_3, %c1, %c0_4, %c0_5] : memref<1x4x8x32xf32, #tpu.memory_space<vmem>>, vector<1x1x8x32xf32>
    %3 = vector.shape_cast %2 : vector<1x1x8x32xf32> to vector<8x32xf32>
    %c0_6 = arith.constant 0 : index
    %c2 = arith.constant 2 : index
    %c0_7 = arith.constant 0 : index
    %c0_8 = arith.constant 0 : index
    %4 = vector.load %arg4[%c0_6, %c2, %c0_7, %c0_8] : memref<1x4x8x32xf32, #tpu.memory_space<vmem>>, vector<1x1x8x32xf32>
    %5 = vector.shape_cast %4 : vector<1x1x8x32xf32> to vector<8x32xf32>
    %c0_9 = arith.constant 0 : index
    %c3 = arith.constant 3 : index
    %c0_10 = arith.constant 0 : index
    %c0_11 = arith.constant 0 : index
    %6 = vector.load %arg4[%c0_9, %c3, %c0_10, %c0_11] : memref<1x4x8x32xf32, #tpu.memory_space<vmem>>, vector<1x1x8x32xf32>
    %7 = vector.shape_cast %6 : vector<1x1x8x32xf32> to vector<8x32xf32>
    %cst = arith.constant 0.000000e+00 : f32
    %8 = vector.broadcast %cst : f32 to vector<8x32xf32>
    %c0_12 = arith.constant 0 : index
    %9 = memref.load %arg3[%c0_12] : memref<3xf32, #tpu.memory_space<smem>>
    %c0_13 = arith.constant 0 : index
    %c0_14 = arith.constant 0 : index
    %10 = memref.load %arg2[%c0_13, %c0_14] : memref<4x3xf32, #tpu.memory_space<smem>>
    %11 = vector.broadcast %10 : f32 to vector<8x32xf32>
    %12 = arith.mulf %11, %1 : vector<8x32xf32>
    %13 = vector.broadcast %9 : f32 to vector<8x32xf32>
    %14 = arith.addf %13, %12 : vector<8x32xf32>
    %c1_15 = arith.constant 1 : index
    %c0_16 = arith.constant 0 : index
    %15 = memref.load %arg2[%c1_15, %c0_16] : memref<4x3xf32, #tpu.memory_space<smem>>
    %16 = vector.broadcast %15 : f32 to vector<8x32xf32>
    %17 = arith.mulf %16, %3 : vector<8x32xf32>
    %18 = arith.addf %14, %17 : vector<8x32xf32>
    %c2_17 = arith.constant 2 : index
    %c0_18 = arith.constant 0 : index
    %19 = memref.load %arg2[%c2_17, %c0_18] : memref<4x3xf32, #tpu.memory_space<smem>>
    %20 = vector.broadcast %19 : f32 to vector<8x32xf32>
    %21 = arith.mulf %20, %5 : vector<8x32xf32>
    %22 = arith.addf %18, %21 : vector<8x32xf32>
    %c3_19 = arith.constant 3 : index
    %c0_20 = arith.constant 0 : index
    %23 = memref.load %arg2[%c3_19, %c0_20] : memref<4x3xf32, #tpu.memory_space<smem>>
    %24 = vector.broadcast %23 : f32 to vector<8x32xf32>
    %25 = arith.mulf %24, %7 : vector<8x32xf32>
    %26 = arith.addf %22, %25 : vector<8x32xf32>
    %c0_21 = arith.constant 0 : index
    %c0_22 = arith.constant 0 : index
    %c0_23 = arith.constant 0 : index
    %c0_24 = arith.constant 0 : index
    %27 = vector.load %arg5[%c0_21, %c0_22, %c0_23, %c0_24] : memref<1x3x8x32xf32, #tpu.memory_space<vmem>>, vector<1x1x8x32xf32>
    %28 = vector.shape_cast %27 : vector<1x1x8x32xf32> to vector<8x32xf32>
    %cst_25 = arith.constant 0.000000e+00 : f32
    %29 = vector.broadcast %cst_25 : f32 to vector<8x32xf32>
    %30 = arith.maximumf %26, %29 : vector<8x32xf32>
    %31 = arith.mulf %26, %28 : vector<8x32xf32>
    %32 = arith.subf %30, %31 : vector<8x32xf32>
    %33 = math.absf %26 : vector<8x32xf32>
    %cst_26 = arith.constant 0.000000e+00 : f32
    %34 = vector.broadcast %cst_26 : f32 to vector<8x32xf32>
    %35 = arith.subf %34, %33 : vector<8x32xf32>
    %36 = math.exp %35 : vector<8x32xf32>
    %37 = math.log1p %36 : vector<8x32xf32>
    %38 = arith.addf %32, %37 : vector<8x32xf32>
    %39 = arith.addf %8, %38 : vector<8x32xf32>
    %c1_27 = arith.constant 1 : index
    %40 = memref.load %arg3[%c1_27] : memref<3xf32, #tpu.memory_space<smem>>
    %c0_28 = arith.constant 0 : index
    %c1_29 = arith.constant 1 : index
    %41 = memref.load %arg2[%c0_28, %c1_29] : memref<4x3xf32, #tpu.memory_space<smem>>
    %42 = vector.broadcast %41 : f32 to vector<8x32xf32>
    %43 = arith.mulf %42, %1 : vector<8x32xf32>
    %44 = vector.broadcast %40 : f32 to vector<8x32xf32>
    %45 = arith.addf %44, %43 : vector<8x32xf32>
    %c1_30 = arith.constant 1 : index
    %c1_31 = arith.constant 1 : index
    %46 = memref.load %arg2[%c1_30, %c1_31] : memref<4x3xf32, #tpu.memory_space<smem>>
    %47 = vector.broadcast %46 : f32 to vector<8x32xf32>
    %48 = arith.mulf %47, %3 : vector<8x32xf32>
    %49 = arith.addf %45, %48 : vector<8x32xf32>
    %c2_32 = arith.constant 2 : index
    %c1_33 = arith.constant 1 : index
    %50 = memref.load %arg2[%c2_32, %c1_33] : memref<4x3xf32, #tpu.memory_space<smem>>
    %51 = vector.broadcast %50 : f32 to vector<8x32xf32>
    %52 = arith.mulf %51, %5 : vector<8x32xf32>
    %53 = arith.addf %49, %52 : vector<8x32xf32>
    %c3_34 = arith.constant 3 : index
    %c1_35 = arith.constant 1 : index
    %54 = memref.load %arg2[%c3_34, %c1_35] : memref<4x3xf32, #tpu.memory_space<smem>>
    %55 = vector.broadcast %54 : f32 to vector<8x32xf32>
    %56 = arith.mulf %55, %7 : vector<8x32xf32>
    %57 = arith.addf %53, %56 : vector<8x32xf32>
    %c0_36 = arith.constant 0 : index
    %c1_37 = arith.constant 1 : index
    %c0_38 = arith.constant 0 : index
    %c0_39 = arith.constant 0 : index
    %58 = vector.load %arg5[%c0_36, %c1_37, %c0_38, %c0_39] : memref<1x3x8x32xf32, #tpu.memory_space<vmem>>, vector<1x1x8x32xf32>
    %59 = vector.shape_cast %58 : vector<1x1x8x32xf32> to vector<8x32xf32>
    %cst_40 = arith.constant 0.000000e+00 : f32
    %60 = vector.broadcast %cst_40 : f32 to vector<8x32xf32>
    %61 = arith.maximumf %57, %60 : vector<8x32xf32>
    %62 = arith.mulf %57, %59 : vector<8x32xf32>
    %63 = arith.subf %61, %62 : vector<8x32xf32>
    %64 = math.absf %57 : vector<8x32xf32>
    %cst_41 = arith.constant 0.000000e+00 : f32
    %65 = vector.broadcast %cst_41 : f32 to vector<8x32xf32>
    %66 = arith.subf %65, %64 : vector<8x32xf32>
    %67 = math.exp %66 : vector<8x32xf32>
    %68 = math.log1p %67 : vector<8x32xf32>
    %69 = arith.addf %63, %68 : vector<8x32xf32>
    %70 = arith.addf %39, %69 : vector<8x32xf32>
    %c2_42 = arith.constant 2 : index
    %71 = memref.load %arg3[%c2_42] : memref<3xf32, #tpu.memory_space<smem>>
    %c0_43 = arith.constant 0 : index
    %c2_44 = arith.constant 2 : index
    %72 = memref.load %arg2[%c0_43, %c2_44] : memref<4x3xf32, #tpu.memory_space<smem>>
    %73 = vector.broadcast %72 : f32 to vector<8x32xf32>
    %74 = arith.mulf %73, %1 : vector<8x32xf32>
    %75 = vector.broadcast %71 : f32 to vector<8x32xf32>
    %76 = arith.addf %75, %74 : vector<8x32xf32>
    %c1_45 = arith.constant 1 : index
    %c2_46 = arith.constant 2 : index
    %77 = memref.load %arg2[%c1_45, %c2_46] : memref<4x3xf32, #tpu.memory_space<smem>>
    %78 = vector.broadcast %77 : f32 to vector<8x32xf32>
    %79 = arith.mulf %78, %3 : vector<8x32xf32>
    %80 = arith.addf %76, %79 : vector<8x32xf32>
    %c2_47 = arith.constant 2 : index
    %c2_48 = arith.constant 2 : index
    %81 = memref.load %arg2[%c2_47, %c2_48] : memref<4x3xf32, #tpu.memory_space<smem>>
    %82 = vector.broadcast %81 : f32 to vector<8x32xf32>
    %83 = arith.mulf %82, %5 : vector<8x32xf32>
    %84 = arith.addf %80, %83 : vector<8x32xf32>
    %c3_49 = arith.constant 3 : index
    %c2_50 = arith.constant 2 : index
    %85 = memref.load %arg2[%c3_49, %c2_50] : memref<4x3xf32, #tpu.memory_space<smem>>
    %86 = vector.broadcast %85 : f32 to vector<8x32xf32>
    %87 = arith.mulf %86, %7 : vector<8x32xf32>
    %88 = arith.addf %84, %87 : vector<8x32xf32>
    %c0_51 = arith.constant 0 : index
    %c2_52 = arith.constant 2 : index
    %c0_53 = arith.constant 0 : index
    %c0_54 = arith.constant 0 : index
    %89 = vector.load %arg5[%c0_51, %c2_52, %c0_53, %c0_54] : memref<1x3x8x32xf32, #tpu.memory_space<vmem>>, vector<1x1x8x32xf32>
    %90 = vector.shape_cast %89 : vector<1x1x8x32xf32> to vector<8x32xf32>
    %cst_55 = arith.constant 0.000000e+00 : f32
    %91 = vector.broadcast %cst_55 : f32 to vector<8x32xf32>
    %92 = arith.maximumf %88, %91 : vector<8x32xf32>
    %93 = arith.mulf %88, %90 : vector<8x32xf32>
    %94 = arith.subf %92, %93 : vector<8x32xf32>
    %95 = math.absf %88 : vector<8x32xf32>
    %cst_56 = arith.constant 0.000000e+00 : f32
    %96 = vector.broadcast %cst_56 : f32 to vector<8x32xf32>
    %97 = arith.subf %96, %95 : vector<8x32xf32>
    %98 = math.exp %97 : vector<8x32xf32>
    %99 = math.log1p %98 : vector<8x32xf32>
    %100 = arith.addf %94, %99 : vector<8x32xf32>
    %101 = arith.addf %70, %100 : vector<8x32xf32>
    %102 = vector.shape_cast %101 : vector<8x32xf32> to vector<1x8x32xf32>
    %cst_57 = arith.constant dense<0.000000e+00> : vector<1xf32>
    %103 = vector.multi_reduction <add>, %102, %cst_57 [1, 2] : vector<1x8x32xf32> to vector<1xf32>
    %104 = vector.shape_cast %103 : vector<1xf32> to vector<1x1x1xf32>
    %105 = vector.extract %104[0, 0, 0] : f32 from vector<1x1x1xf32>
    %106 = vector.broadcast %105 : f32 to vector<1x1xf32>
    %c0_58 = arith.constant 0 : index
    %c0_59 = arith.constant 0 : index
    %c0_60 = arith.constant 0 : index
    %c0_61 = arith.constant 0 : index
    %107 = vector.load %arg6[%c0_58, %c0_59, %c0_60, %c0_61] : memref<1x1x1x1xf32, #tpu.memory_space<vmem>>, vector<1x1x1x1xf32>
    %108 = vector.shape_cast %107 : vector<1x1x1x1xf32> to vector<1x1xf32>
    %109 = vector.shape_cast %106 : vector<1x1xf32> to vector<1x1x1x1xf32>
    tpu.vector_store %arg6[%c0_58, %c0_59, %c0_60, %c0_61], %109 {strides = array<i32>} : memref<1x1x1x1xf32, #tpu.memory_space<vmem>>, vector<1x1x1x1xf32>,
    return
  }
  func.func @transform_0(%arg0: i32, %arg1: i32) -> (i32, i32) {
    %c0_i32 = arith.constant 0 : i32
    %c0_i32_0 = arith.constant 0 : i32
    %c0_i32_1 = arith.constant 0 : i32
    return %c0_i32, %c0_i32_0 : i32, i32
  }
  func.func @transform_1(%arg0: i32, %arg1: i32) -> i32 {
    %c0_i32 = arith.constant 0 : i32
    %c0_i32_0 = arith.constant 0 : i32
    return %c0_i32 : i32
  }
  func.func @transform_2(%arg0: i32, %arg1: i32) -> (i32, i32, i32, i32) {
    %c0_i32 = arith.constant 0 : i32
    %c0_i32_0 = arith.constant 0 : i32
    %c0_i32_1 = arith.constant 0 : i32
    return %arg0, %c0_i32, %c0_i32_0, %arg1 : i32, i32, i32, i32
  }
  func.func @transform_3(%arg0: i32, %arg1: i32) -> (i32, i32, i32, i32) {
    %c0_i32 = arith.constant 0 : i32
    %c0_i32_0 = arith.constant 0 : i32
    %c0_i32_1 = arith.constant 0 : i32
    return %arg0, %c0_i32, %c0_i32_0, %arg1 : i32, i32, i32, i32
  }
  func.func @transform_4(%arg0: i32, %arg1: i32) -> (i32, i32, i32, i32) {
    %c0_i32 = arith.constant 0 : i32
    %c0_i32_0 = arith.constant 0 : i32
    %c0_i32_1 = arith.constant 0 : i32
    return %arg0, %arg1, %c0_i32, %c0_i32_0 : i32, i32, i32, i32
  }
}

</mosaic_0001>

<llo_original>
// kernel: tpu_custom_call.1
$region0: #{tpu_custom_call.1}
  #allocation0 [shape = 'u32[]', space=smem, size = 0x4, offset = 0x4, fixed_abs, tag = 'smem constant byte address 0x4 - core index']
  #allocation1 [shape = 'u32[72,128]{1,0:T(1,128)}', space=vmem, size = 0x9000, scoped, tag = 'internal scratch']
  %s0 = inlined_call_operand.hbm [shape: f32[4,3], index: 0, kind: input, shape index: {}]
  %s1 = inlined_call_operand.hbm [shape: f32[3], index: 1, kind: input, shape index: {}]
  %s2 = inlined_call_operand.hbm [shape: f32[2,4,8,32], index: 2, kind: input, shape index: {}]
  %s3 = inlined_call_operand.hbm [shape: f32[2,3,8,32], index: 3, kind: input, shape index: {}]
  %s4 = inlined_call_operand.vmem [shape: f32[2,1,1,1], index: 4, kind: output, shape index: {}]
  %s5 = sld [smem:[#allocation0]]
  $region65: #{tpu_custom_call.1} parent=0
    _
  %s7 = ssub.s32 1, %s5
  %s8 = scalar_select 0, %s7, %s5
  $region1: #{tpu_custom_call.1} parent=0
    #allocation2 [shape = 'u8[2048]{0}', space=smem, size = 0x800, scoped, tag = 'input window, operand 0, single buffered']
    #allocation3 [shape = 's32[2]{0}', space=sflag, size = 0x8, scoped, tag = 'scoped memory for tpu_custom_call.1']
    #allocation4 [shape = 's32[2]{0}', space=sflag, size = 0x8, scoped, tag = 'scoped memory for tpu_custom_call.1']
    #allocation5 [shape = 'u8[512]{0}', space=smem, size = 0x200, scoped, tag = 'input window, operand 1, single buffered']
    #allocation6 [shape = 's32[1]{0}', space=sflag, size = 0x4, scoped, tag = 'scoped memory for tpu_custom_call.1']
    #allocation7 [shape = 'u8[32768]{0}', space=vmem, size = 0x8000, scoped, tag = 'input window, operand 2']
    #allocation8 [shape = 'u8[24576]{0}', space=vmem, size = 0x6000, scoped, tag = 'input window, operand 3']
    #allocation9 [shape = 's32[2]{0}', space=sflag, size = 0x8, scoped, tag = 'scoped memory for tpu_custom_call.1']
    %9 = vsyncpa [#allocation4], 0
    %10 = vsyncpa [#allocation6], 0
    %11 = vsyncpa [#allocation3], 0
    %s12 = scalar_lea.sflag [#allocation3], 1
    %13 = vsyncpa %s12, 0
    %14 = vsyncpa [#allocation9], 0
    %s15 = scalar_lea.sflag [#allocation9], 1
    %16 = vsyncpa %s15, 0
    loop: start=0, step=1, limit=4
    $region2: #{tpu_custom_call.1} parent=1 // loop_pre_header
      _
    $region3: #{tpu_custom_call.1} parent=1 // loop_header
      %s18 = sphi 0, %s22
      %p19 = scmp.ge.s32.totalorder %s18, 4
      %s25 = sphi 0, %s37
      %s26 = sphi 0, %s33
      %s27 = sphi 0, %s25
      %s28 = sphi 0, %s26
      %s29 = sphi 0, %s27
      %s30 = sphi 0, %s28
      %s38 = sphi 0, %s38
      %s40 = sphi 0, %s38
      %s41 = sphi 0, %s40
      %s55 = sphi 0, %s41
      %s59 = sphi 0, %s59
      %s61 = sphi 0, %s59
      %s62 = sphi 0, %s61
      %s76 = sphi 0, %s62
      %s84 = sphi 0, %s86
      %s87 = sphi 0, %s84
      %s88 = sphi 0, %s87
      %s104 = sphi 0, %s88
      %s112 = sphi 0, %s114
      %s115 = sphi 0, %s112
      %s116 = sphi 0, %s115
      %s132 = sphi 0, %s116
      %s140 = sphi 0, %s142
      %s143 = sphi 0, %s140
      %s144 = sphi 0, %s143
      %s160 = sphi 0, %s144
    $region4: #{tpu_custom_call.1} parent=1 // loop_header_branch
      %21 = sbr.rel (%p19) target = $region8
    $region5: #{tpu_custom_call.1} parent=1 // loop_body
      %s23 = ssub.s32 %s18, 1
      %s24 = ssub.s32 %s18, 2
      %s31 = sadd.s32 1, %s26
      %p32 = scmp.ge.s32.totalorder %s31, 1
      %s33 = scalar_select %p32, 0, %s31
      %s34 = sadd.s32 1, %s25
      %s35 = scalar_select %p32, %s34, %s25
      %p36 = scmp.ge.s32.totalorder %s35, 2
      %s37 = scalar_select %p36, 0, %s35
      %s39 = sadd.s32 %s38, 1
      %p42 = scmp.eq.s32.totalorder %s18, 1
      %p43 = scmp.ne.s32.totalorder %s38, %s40
      %p44 = scmp.eq.s32.totalorder %s18, 0
      %p45 = por %p43, %p44
      %p46 = scmp.ne.s32.totalorder %s38, %s40
      %p47 = scmp.eq.s32.totalorder %s23, 1
      %p48 = por %p46, %p47
      %p49 = scmp.ne.s32.totalorder %s40, %s41
      %p50 = scmp.eq.s32.totalorder %s23, 0
      %p51 = por %p49, %p50
      %p52 = scmp.ne.s32.totalorder %s40, %s41
      %p53 = scmp.eq.s32.totalorder %s24, 1
      %p54 = por %p52, %p53
      %p56 = scmp.ne.s32.totalorder %s41, %s55
      %p57 = scmp.eq.s32.totalorder %s24, 0
      %p58 = por %p56, %p57
      %s60 = sadd.s32 %s59, 1
      %p63 = scmp.eq.s32.totalorder %s18, 1
      %p64 = scmp.ne.s32.totalorder %s59, %s61
      %p65 = scmp.eq.s32.totalorder %s18, 0
      %p66 = por %p64, %p65
      %p67 = scmp.ne.s32.totalorder %s59, %s61
      %p68 = scmp.eq.s32.totalorder %s23, 1
      %p69 = por %p67, %p68
      %p70 = scmp.ne.s32.totalorder %s61, %s62
      %p71 = scmp.eq.s32.totalorder %s23, 0
      %p72 = por %p70, %p71
      %p73 = scmp.ne.s32.totalorder %s61, %s62
      %p74 = scmp.eq.s32.totalorder %s24, 1
      %p75 = por %p73, %p74
      %p77 = scmp.ne.s32.totalorder %s62, %s76
      %p78 = scmp.eq.s32.totalorder %s24, 0
      %p79 = por %p77, %p78
      %s80 = ssub.s32 %s25, %s37
      %s81 = ssub.s32 %s26, %s33
      %s82 = sor.u32 %s80, %s81
      %p83 = scmp.eq.s32.totalorder %s82, 0
      %s85 = sadd.s32 %s84, 1
      %s86 = scalar_select %p83, %s84, %s85
      %p89 = pneg %p83
      %p90 = scmp.eq.s32.totalorder %s18, 1
      %p91 = por %p89, %p90
      %p92 = scmp.ne.s32.totalorder %s84, %s87
      %p93 = scmp.eq.s32.totalorder %s18, 0
      %p94 = por %p92, %p93
      %p95 = scmp.ne.s32.totalorder %s84, %s87
      %p96 = scmp.eq.s32.totalorder %s23, 1
      %p97 = por %p95, %p96
      %p98 = scmp.ne.s32.totalorder %s87, %s88
      %p99 = scmp.eq.s32.totalorder %s23, 0
      %p100 = por %p98, %p99
      %p101 = scmp.ne.s32.totalorder %s87, %s88
      %p102 = scmp.eq.s32.totalorder %s24, 1
      %p103 = por %p101, %p102
      %p105 = scmp.ne.s32.totalorder %s88, %s104
      %p106 = scmp.eq.s32.totalorder %s24, 0
      %p107 = por %p105, %p106
      %s108 = ssub.s32 %s25, %s37
      %s109 = ssub.s32 %s26, %s33
      %s110 = sor.u32 %s108, %s109
      %p111 = scmp.eq.s32.totalorder %s110, 0
      %s113 = sadd.s32 %s112, 1
      %s114 = scalar_select %p111, %s112, %s113
      %p117 = pneg %p111
      %p118 = scmp.eq.s32.totalorder %s18, 1
      %p119 = por %p117, %p118
      %p120 = scmp.ne.s32.totalorder %s112, %s115
      %p121 = scmp.eq.s32.totalorder %s18, 0
      %p122 = por %p120, %p121
      %p123 = scmp.ne.s32.totalorder %s112, %s115
      %p124 = scmp.eq.s32.totalorder %s23, 1
      %p125 = por %p123, %p124
      %p126 = scmp.ne.s32.totalorder %s115, %s116
      %p127 = scmp.eq.s32.totalorder %s23, 0
      %p128 = por %p126, %p127
      %p129 = scmp.ne.s32.totalorder %s115, %s116
      %p130 = scmp.eq.s32.totalorder %s24, 1
      %p131 = por %p129, %p130
      %p133 = scmp.ne.s32.totalorder %s116, %s132
      %p134 = scmp.eq.s32.totalorder %s24, 0
      %p135 = por %p133, %p134
      %s136 = ssub.s32 %s25, %s37
      %s137 = ssub.s32 %s26, %s33
      %s138 = sor.u32 %s136, %s137
      %p139 = scmp.eq.s32.totalorder %s138, 0
      %s141 = sadd.s32 %s140, 1
      %s142 = scalar_select %p139, %s140, %s141
      %p145 = pneg %p139
      %p146 = scmp.eq.s32.totalorder %s18, 1
      %p147 = por %p145, %p146
      %p148 = scmp.ne.s32.totalorder %s140, %s143
      %p149 = scmp.eq.s32.totalorder %s18, 0
      %p150 = por %p148, %p149
      %p151 = scmp.ne.s32.totalorder %s140, %s143
      %p152 = scmp.eq.s32.totalorder %s23, 1
      %p153 = por %p151, %p152
      %p154 = scmp.ne.s32.totalorder %s143, %s144
      %p155 = scmp.eq.s32.totalorder %s23, 0
      %p156 = por %p154, %p155
      %p157 = scmp.ne.s32.totalorder %s143, %s144
      %p158 = scmp.eq.s32.totalorder %s24, 1
      %p159 = por %p157, %p158
      %p161 = scmp.ne.s32.totalorder %s144, %s160
      %p162 = scmp.eq.s32.totalorder %s24, 0
      %p163 = por %p161, %p162
      %p164 = scmp.le.s32.totalorder 1, %s18
      %p165 = scmp.lt.s32.totalorder %s18, 3
      %p166 = pnand %p164, %p165
      %p167 = pneg %p166
      // Predicated region
      $region9: #{tpu_custom_call.1} parent=5 // pred_check
        _
      $region10: #{tpu_custom_call.1} parent=5 // pred_check_branch
        %169 = sbr.rel (%p166) target = $region12
      $region11: #{tpu_custom_call.1} parent=5 // pred_region
        %s170 = ssub.s32 %s18, 1
        // Predicated region
        $region13: #{tpu_custom_call.1} parent=11 // pred_check
          %p171 = pneg %p51
        $region14: #{tpu_custom_call.1} parent=11 // pred_check_branch
          %173 = sbr.rel (%p171) target = $region16
        $region15: #{tpu_custom_call.1} parent=11 // pred_region
          %175 = vsyncadd [#allocation4], 0
          %s177 = sshll.u32 %s0, 4
          %s178 = int_to_ptr.hbm [resolvable:$true] %s177
          %180 = dma.hbm_to_smem %s178, 64, [#allocation2], [#allocation4]
        $region16: #{tpu_custom_call.1} parent=11 // pred_fallthru
          _
        // Predicated region
        $region17: #{tpu_custom_call.1} parent=11 // pred_check
          %p181 = pneg %p72
        $region18: #{tpu_custom_call.1} parent=11 // pred_check_branch
          %183 = sbr.rel (%p181) target = $region20
        $region19: #{tpu_custom_call.1} parent=11 // pred_region
          %185 = vsyncadd [#allocation6], 0
          %s187 = sshll.u32 %s1, 4
          %s188 = int_to_ptr.hbm [resolvable:$true] %s187
          %190 = dma.hbm_to_smem %s188, 16, [#allocation5], [#allocation6]
        $region20: #{tpu_custom_call.1} parent=11 // pred_fallthru
          _
      $region12: #{tpu_custom_call.1} parent=5 // pred_fallthru
        _
      %p191 = scmp.lt.s32.totalorder %s18, 2
      // Predicated region
      $region21: #{tpu_custom_call.1} parent=5 // pred_check
        %p192 = pneg %p191
      $region22: #{tpu_custom_call.1} parent=5 // pred_check_branch
        %194 = sbr.rel (%p192) target = $region24
      $region23: #{tpu_custom_call.1} parent=5 // pred_region
        // Predicated region
        $region25: #{tpu_custom_call.1} parent=23 // pred_check
          %p195 = pneg %p94
        $region26: #{tpu_custom_call.1} parent=23 // pred_check_branch
          %197 = sbr.rel (%p195) target = $region28
        $region27: #{tpu_custom_call.1} parent=23 // pred_region
          %s198 = sand.u32 %s84, 1
          %s199 = scalar_lea.sflag [#allocation3], %s198
          %s200 = sand.u32 %s84, 1
          %s201 = smul.addr %s200, 32
          %s202 = scalar_lea.vmem [#allocation7], %s201
          %204 = vsyncadd %s199, 0
          %s205 = smul.addr %s25, 4
          %s206 = sadd.s32 %s26, %s205
          %s207 = smul.addr %s206, 8
          %s208 = scalar_lea.hbm %s2, %s207
          %s209 = sshll.u32 %s208, 4
          %s210 = int_to_ptr.hbm [resolvable:$true] %s209
          %s211 = sshll.u32 %s202, 4
          %s212 = int_to_ptr.vmem [resolvable:$true] %s211
          %217 = dma.hbm_to_vmem [thread:$0]  %s210, 512, %s212, %s199, 128, 128, 8
        $region28: #{tpu_custom_call.1} parent=23 // pred_fallthru
          _
        // Predicated region
        $region29: #{tpu_custom_call.1} parent=23 // pred_check
          %p218 = pneg %p122
        $region30: #{tpu_custom_call.1} parent=23 // pred_check_branch
          %220 = sbr.rel (%p218) target = $region32
        $region31: #{tpu_custom_call.1} parent=23 // pred_region
          %s221 = sand.u32 %s112, 1
          %s222 = scalar_lea.sflag [#allocation9], %s221
          %s223 = sand.u32 %s112, 1
          %s224 = smul.addr %s223, 24
          %s225 = scalar_lea.vmem [#allocation8], %s224
          %227 = vsyncadd %s222, 0
          %s228 = smul.addr %s25, 3
          %s229 = sadd.s32 %s26, %s228
          %s230 = smul.addr %s229, 8
          %s231 = scalar_lea.hbm %s3, %s230
          %s232 = sshll.u32 %s231, 4
          %s233 = int_to_ptr.hbm [resolvable:$true] %s232
          %s234 = sshll.u32 %s225, 4
          %s235 = int_to_ptr.vmem [resolvable:$true] %s234
          %240 = dma.hbm_to_vmem [thread:$0]  %s233, 384, %s235, %s222, 128, 128, 8
        $region32: #{tpu_custom_call.1} parent=23 // pred_fallthru
          _
      $region24: #{tpu_custom_call.1} parent=5 // pred_fallthru
        _
      %p241 = scmp.le.s32.totalorder 1, %s18
      %p242 = scmp.lt.s32.totalorder %s18, 3
      %p243 = pnand %p241, %p242
      %p244 = pneg %p243
      // Predicated region
      $region33: #{tpu_custom_call.1} parent=5 // pred_check
        _
      $region34: #{tpu_custom_call.1} parent=5 // pred_check_branch
        %246 = sbr.rel (%p243) target = $region36
      $region35: #{tpu_custom_call.1} parent=5 // pred_region
        %s247 = ssub.s32 %s18, 1
        // Predicated region
        $region37: #{tpu_custom_call.1} parent=35 // pred_check
          %p248 = pneg %p51
        $region38: #{tpu_custom_call.1} parent=35 // pred_check_branch
          %250 = sbr.rel (%p248) target = $region40
        $region39: #{tpu_custom_call.1} parent=35 // pred_region
          %252 = dma.done [#allocation4], 64
        $region40: #{tpu_custom_call.1} parent=35 // pred_fallthru
          _
        // Predicated region
        $region41: #{tpu_custom_call.1} parent=35 // pred_check
          %p253 = pneg %p72
        $region42: #{tpu_custom_call.1} parent=35 // pred_check_branch
          %255 = sbr.rel (%p253) target = $region44
        $region43: #{tpu_custom_call.1} parent=35 // pred_region
          %257 = dma.done [#allocation6], 16
        $region44: #{tpu_custom_call.1} parent=35 // pred_fallthru
          _
        %s258 = sand.u32 %s87, 1
        %s259 = scalar_lea.sflag [#allocation3], %s258
        %s260 = sand.u32 %s87, 1
        %s261 = smul.addr %s260, 32
        %s262 = scalar_lea.vmem [#allocation7], %s261
        // Predicated region
        $region45: #{tpu_custom_call.1} parent=35 // pred_check
          %p263 = pneg %p100
        $region46: #{tpu_custom_call.1} parent=35 // pred_check_branch
          %265 = sbr.rel (%p263) target = $region48
        $region47: #{tpu_custom_call.1} parent=35 // pred_region
          %267 = dma.done %s259, 512
        $region48: #{tpu_custom_call.1} parent=35 // pred_fallthru
          _
        %s268 = sand.u32 %s115, 1
        %s269 = scalar_lea.sflag [#allocation9], %s268
        %s270 = sand.u32 %s115, 1
        %s271 = smul.addr %s270, 24
        %s272 = scalar_lea.vmem [#allocation8], %s271
        // Predicated region
        $region49: #{tpu_custom_call.1} parent=35 // pred_check
          %p273 = pneg %p128
        $region50: #{tpu_custom_call.1} parent=35 // pred_check_branch
          %275 = sbr.rel (%p273) target = $region52
        $region51: #{tpu_custom_call.1} parent=35 // pred_region
          %277 = dma.done %s269, 384
        $region52: #{tpu_custom_call.1} parent=35 // pred_fallthru
          _
        %278 = sfence
        %p279 = pneg %p51
        %p280 = pneg %p48
        %p281 = pneg %p72
        %p282 = pneg %p69
        %s283 = sand.u32 %s87, 1
        %s284 = scalar_lea.sflag [#allocation3], %s283
        %s285 = sand.u32 %s87, 1
        %s286 = smul.addr %s285, 32
        %s287 = scalar_lea.vmem [#allocation7], %s286
        %p288 = pneg %p100
        %p289 = pneg %p97
        %s290 = sand.u32 %s115, 1
        %s291 = scalar_lea.sflag [#allocation9], %s290
        %s292 = sand.u32 %s115, 1
        %s293 = smul.addr %s292, 24
        %s294 = scalar_lea.vmem [#allocation8], %s293
        %p295 = pneg %p128
        %p296 = pneg %p125
        %p297 = pneg %p156
        %p298 = pneg %p153
        %p299 = scmp.lt.s32.totalorder %s27, 1
        %s300 = scalar_select %p299, %s27, 1
        %p301 = scmp.lt.s32.totalorder %s28, 0
        %s302 = scalar_select %p301, %s28, 0
        %s303 = sadd.s32 %s302, %s300
        %s304 = scalar_lea.vmem %s4, %s303
        %p305 = scmp.lt.s32.totalorder %s27, 1
        %s306 = scalar_select %p305, %s27, 1
        %p307 = scmp.lt.s32.totalorder %s28, 0
        %s308 = scalar_select %p307, %s28, 0
        %s309 = sadd.s32 %s308, %s306
        %s310 = scalar_lea.vmem %s4, %s309
        %v311 = vld [vmem:[%s262] sm:$0xff]
        %s312 = scalar_lea.vmem %s262, 8 [#allocation7]
        %v313 = vld [vmem:[%s312] sm:$0xff]
        %s314 = scalar_lea.vmem %s262, 16 [#allocation7]
        %v315 = vld [vmem:[%s314] sm:$0xff]
        %s316 = scalar_lea.vmem %s262, 24 [#allocation7]
        %v317 = vld [vmem:[%s316] sm:$0xff]
        %s318 = sld [smem:[#allocation5]]
        %s319 = sld [smem:[#allocation2]]
        %v320 = vstv %s319
        %v321 = vmul.f32 %v320, %v311
        %v322 = vstv %s318
        %v323 = vadd.f32 %v322, %v321
        %s324 = sld [smem:[#allocation2 + $0x80]]
        %v325 = vstv %s324
        %v326 = vmul.f32 %v325, %v313
        %v327 = vadd.f32 %v323, %v326
        %s328 = sld [smem:[#allocation2 + $0x100]]
        %v329 = vstv %s328
        %v330 = vmul.f32 %v329, %v315
        %v331 = vadd.f32 %v327, %v330
        %s332 = sld [smem:[#allocation2 + $0x180]]
        %v333 = vstv %s332
        %v334 = vmul.f32 %v333, %v317
        %v335 = vadd.f32 %v331, %v334
        %v336 = vld [vmem:[%s272] sm:$0xff]
        %v337 = vmax.f32 %v335, 0.0
        %v338 = vmul.f32 %v335, %v336
        %v339 = vsub.f32 %v337, %v338
        %v340 = vand.u32 2147483647, %v335
        %v341 = vsub.f32 0.0, %v340
        %v342 = vmul.f32 %v341, 1.442695
        %v343 = vpow.pop %v342
        %v344 = vadd.f32 %v343, 1.0
        %v345 = vlog2.pop %v344
        %v346 = vmul.f32 %v345, 0.6931472
        %v347 = vmul.f32 -0.5, %v343
        %v348 = vadd.f32 %v347, 1.0
        %v349 = vmul.f32 %v348, %v343
        %v350 = vand.u32 2147483647, %v343
        %vm351 = vcmp.lt.f32.partialorder %v350, 0.0004427343
        %v352 = vsel %vm351, %v349, %v346
        %v353 = vadd.f32 %v339, %v352
        %v354 = vadd.f32 %v353, 0.0
        %s355 = sld [smem:[#allocation5 + $0x1]]
        %s356 = sld [smem:[#allocation2 + $0x1]]
        %v357 = vstv %s356
        %v358 = vmul.f32 %v357, %v311
        %v359 = vstv %s355
        %v360 = vadd.f32 %v359, %v358
        %s361 = sld [smem:[#allocation2 + $0x81]]
        %v362 = vstv %s361
        %v363 = vmul.f32 %v362, %v313
        %v364 = vadd.f32 %v360, %v363
        %s365 = sld [smem:[#allocation2 + $0x101]]
        %v366 = vstv %s365
        %v367 = vmul.f32 %v366, %v315
        %v368 = vadd.f32 %v364, %v367
        %s369 = sld [smem:[#allocation2 + $0x181]]
        %v370 = vstv %s369
        %v371 = vmul.f32 %v370, %v317
        %v372 = vadd.f32 %v368, %v371
        %s373 = scalar_lea.vmem %s272, 8 [#allocation8]
        %v374 = vld [vmem:[%s373] sm:$0xff]
        %v375 = vmax.f32 %v372, 0.0
        %v376 = vmul.f32 %v372, %v374
        %v377 = vsub.f32 %v375, %v376
        %v378 = vand.u32 2147483647, %v372
        %v379 = vsub.f32 0.0, %v378
        %v380 = vmul.f32 %v379, 1.442695
        %v381 = vpow.pop %v380
        %v382 = vadd.f32 %v381, 1.0
        %v383 = vlog2.pop %v382
        %v384 = vmul.f32 %v383, 0.6931472
        %v385 = vmul.f32 -0.5, %v381
        %v386 = vadd.f32 %v385, 1.0
        %v387 = vmul.f32 %v386, %v381
        %v388 = vand.u32 2147483647, %v381
        %vm389 = vcmp.lt.f32.partialorder %v388, 0.0004427343
        %v390 = vsel %vm389, %v387, %v384
        %v391 = vadd.f32 %v377, %v390
        %v392 = vadd.f32 %v354, %v391
        %s393 = sld [smem:[#allocation5 + $0x2]]
        %s394 = sld [smem:[#allocation2 + $0x2]]
        %v395 = vstv %s394
        %v396 = vmul.f32 %v395, %v311
        %v397 = vstv %s393
        %v398 = vadd.f32 %v397, %v396
        %s399 = sld [smem:[#allocation2 + $0x82]]
        %v400 = vstv %s399
        %v401 = vmul.f32 %v400, %v313
        %v402 = vadd.f32 %v398, %v401
        %s403 = sld [smem:[#allocation2 + $0x102]]
        %v404 = vstv %s403
        %v405 = vmul.f32 %v404, %v315
        %v406 = vadd.f32 %v402, %v405
        %s407 = sld [smem:[#allocation2 + $0x182]]
        %v408 = vstv %s407
        %v409 = vmul.f32 %v408, %v317
        %v410 = vadd.f32 %v406, %v409
        %s411 = scalar_lea.vmem %s272, 16 [#allocation8]
        %v412 = vld [vmem:[%s411] sm:$0xff]
        %v413 = vmax.f32 %v410, 0.0
        %v414 = vmul.f32 %v410, %v412
        %v415 = vsub.f32 %v413, %v414
        %v416 = vand.u32 2147483647, %v410
        %v417 = vsub.f32 0.0, %v416
        %v418 = vmul.f32 %v417, 1.442695
        %v419 = vpow.pop %v418
        %v420 = vadd.f32 %v419, 1.0
        %v421 = vlog2.pop %v420
        %v422 = vmul.f32 %v421, 0.6931472
        %v423 = vmul.f32 -0.5, %v419
        %v424 = vadd.f32 %v423, 1.0
        %v425 = vmul.f32 %v424, %v419
        %v426 = vand.u32 2147483647, %v419
        %vm427 = vcmp.lt.f32.partialorder %v426, 0.0004427343
        %v428 = vsel %vm427, %v425, %v422
        %v429 = vadd.f32 %v415, %v428
        %v430 = vadd.f32 %v392, %v429
        %vm431 = vcmask 261120
        %v432 = vsel %vm431, %v430, 0.0
        %433 = vadd.xlane.f32.xlu0 %v432
        %v434 = vpop.xlane.xlu0 %433
        %v435 = vrot.slane %v434, 4
        %v436 = vadd.f32 %v434, %v435
        %v437 = vrot.slane %v436, 2
        %v438 = vadd.f32 %v436, %v437
        %v439 = vrot.slane %v438, 1
        %v440 = vadd.f32 %v438, %v439
        %s441 = vtos %v440
        %v442 = vstv %s441
        %vm443 = vcmask 0
        %444 = vst.msk [vmem:[%s310] sm:$0x1] %vm443, %v442
        %p445 = scmp.lt.s32.totalorder %s27, 1
        %s446 = scalar_select %p445, %s27, 1
        %p447 = scmp.lt.s32.totalorder %s28, 0
        %s448 = scalar_select %p447, %s28, 0
        %s449 = sadd.s32 %s448, %s446
        %s450 = scalar_lea.vmem %s4, %s449
        // Predicated region
        $region53: #{tpu_custom_call.1} parent=35 // pred_check
          %p451 = pneg %p153
        $region54: #{tpu_custom_call.1} parent=35 // pred_check_branch
          %453 = sbr.rel (%p451) target = $region56
        $region55: #{tpu_custom_call.1} parent=35 // pred_region
          _
        $region56: #{tpu_custom_call.1} parent=35 // pred_fallthru
          _
      $region36: #{tpu_custom_call.1} parent=5 // pred_fallthru
        _
      %p454 = scmp.le.s32.totalorder 2, %s18
      // Predicated region
      $region57: #{tpu_custom_call.1} parent=5 // pred_check
        %p455 = pneg %p454
      $region58: #{tpu_custom_call.1} parent=5 // pred_check_branch
        %457 = sbr.rel (%p455) target = $region60
      $region59: #{tpu_custom_call.1} parent=5 // pred_region
        %s458 = ssub.s32 %s18, 2
        // Predicated region
        $region61: #{tpu_custom_call.1} parent=59 // pred_check
          %p459 = pneg %p159
        $region62: #{tpu_custom_call.1} parent=59 // pred_check_branch
          %461 = sbr.rel (%p459) target = $region64
        $region63: #{tpu_custom_call.1} parent=59 // pred_region
          %p462 = scmp.lt.s32.totalorder %s29, 1
          %s463 = scalar_select %p462, %s29, 1
          %p464 = scmp.lt.s32.totalorder %s30, 0
          %s465 = scalar_select %p464, %s30, 0
          %s466 = sadd.s32 %s465, %s463
          %s467 = scalar_lea.vmem %s4, %s466
        $region64: #{tpu_custom_call.1} parent=59 // pred_fallthru
          _
      $region60: #{tpu_custom_call.1} parent=5 // pred_fallthru
        _
    $region6: #{tpu_custom_call.1} parent=1 // loop_footer
      %s22 = sadd.s32 1, %s18
    $region7: #{tpu_custom_call.1} parent=1 // loop_footer_branch
      %17 = sbr.rel target = $region3
    $region8: #{tpu_custom_call.1} parent=1 // loop_exit
      _
    %468 = vsyncpa [#allocation3], 1
    %s469 = scalar_lea.sflag [#allocation3], 1
    %470 = vsyncpa %s469, 1
    %471 = vsyncpa [#allocation9], 1
    %s472 = scalar_lea.sflag [#allocation9], 1
    %473 = vsyncpa %s472, 1
    %474 = vsyncpa [#allocation4], 1
    %s475 = scalar_lea.sflag [#allocation4], 1
    %476 = vsyncpa %s475, 1
    %477 = vsyncpa [#allocation6], 1

</llo_original>
